<compile_context>
chip_gen: v5e
topology: v5e:2x2
jax: 0.10.0
libtpu: 0.0.40
codegen_flags: <defaults>
</compile_context>

<pallas_src>
import jax
import jax.numpy as jnp
from jax.experimental import pallas as pl
from jax.experimental.pallas import tpu as pltpu


def _round_up(a, b):
    return (a + b - 1) // b * b


def _d_graph_kernel(x_ref, w1_ref, b1_ref, w2_ref, b2_ref, w3_ref, b3_ref, o_ref):
    compute_dtype = w1_ref.dtype

    # ---- linear1 + relu (MXU, fp32 accumulate) ----
    x = x_ref[...].astype(compute_dtype)
    h1 = jnp.dot(x, w1_ref[...], preferred_element_type=jnp.float32)
    h1 = jnp.maximum(h1 + b1_ref[...], 0.0)

    # ---- linear2 + relu (MXU, fp32 accumulate) ----
    h2 = jnp.dot(h1.astype(compute_dtype), w2_ref[...],
                 preferred_element_type=jnp.float32)
    h2 = jnp.maximum(h2 + b2_ref[...], 0.0)

    # ---- linear3 ([H2] -> 1): computed as (1, H2) contracted against
    # (tile_m, H2) on its last dim (i.e. w3_row @ h2^T), so the per-tile result
    # is produced lane-dense as a (1, tile_m) row -> unmasked lane-major store
    # instead of 1-lane masked column stores. ----
    out_row = jax.lax.dot_general(
        w3_ref[...], h2,
        dimension_numbers=(((1,), (1,)), ((), ())),
        preferred_element_type=jnp.float32)
    out_row = out_row + b3_ref[...]
    o_ref[...] = out_row.reshape(o_ref.shape).astype(o_ref.dtype)


def prepare_params(params, compute_dtype=jnp.bfloat16):
    """One-time weight preprocessing, hoisted out of the per-call forward path."""
    h2 = params["w2"].shape[1]
    return {
        "w1": params["w1"].astype(compute_dtype),      # [F, 512]
        "b1": params["b1"].astype(jnp.float32),        # [1, 512]
        "w2": params["w2"].astype(compute_dtype),      # [512, H2]
        "b2": params["b2"].astype(jnp.float32),        # [1, H2]
        "w3_row": params["w3"].reshape(1, h2).astype(jnp.float32),  # [1, H2]
        "b3": params["b3"].reshape(1, 1).astype(jnp.float32),       # [1, 1]
    }


def d_graph_forward(x, prepared, *, tile_m=2048, vmem_limit_bytes=None):
    """x: [N, in_features]; prepared: output of prepare_params (layout (in, out))."""
    w1, b1 = prepared["w1"], prepared["b1"]
    w2, b2 = prepared["w2"], prepared["b2"]
    w3_row, b3 = prepared["w3_row"], prepared["b3"]

    n, f = x.shape
    h1 = w1.shape[1]
    h2 = w2.shape[1]

    # Batch tile: large by default (amortizes per-grid-step overhead), clamped
    # to the batch, multiple of 8 sublanes. tile_m=2048 keeps per-step VMEM at
    # ~7-8 MiB -> inside the default scoped limit on v5e/v6e/v7x; raise tile_m
    # and pass vmem_limit_bytes explicitly on v6e/v7x if you want bigger tiles.
    tile_m = max(8, _round_up(min(tile_m, n), 8))
    # Keep >= 2 grid steps for large batches so v7x megacore has work for both
    # TensorCores (neutral on single-TC v5e/v6e).
    if n >= 1024 and pl.cdiv(n, tile_m) < 2:
        tile_m = max(8, _round_up(pl.cdiv(n, 2), 8))
    num_tiles = pl.cdiv(n, tile_m)

    flops = 2 * n * (f * h1 + h1 * h2 + h2)
    bytes_accessed = (
        n * f * x.dtype.itemsize
        + w1.size * w1.dtype.itemsize + b1.size * 4
        + w2.size * w2.dtype.itemsize + b2.size * 4
        + w3_row.size * 4 + b3.size * 4
        + n * 4
    )

    out = pl.pallas_call(
        _d_graph_kernel,
        out_shape=jax.ShapeDtypeStruct((num_tiles, 1, tile_m), jnp.float32),
        grid=(num_tiles,),
        in_specs=[
            pl.BlockSpec((tile_m, f), lambda i: (i, 0)),   # x tile (ragged last block OK)
            pl.BlockSpec((f, h1), lambda i: (0, 0)),       # w1 (resident)
            pl.BlockSpec((1, h1), lambda i: (0, 0)),       # b1
            pl.BlockSpec((h1, h2), lambda i: (0, 0)),      # w2 (resident)
            pl.BlockSpec((1, h2), lambda i: (0, 0)),       # b2
            pl.BlockSpec((1, h2), lambda i: (0, 0)),       # w3 as a row
            pl.BlockSpec((1, 1), lambda i: (0, 0)),        # b3
        ],
        out_specs=pl.BlockSpec((1, 1, tile_m), lambda i: (i, 0, 0)),
        compiler_params=pltpu.CompilerParams(
            dimension_semantics=("parallel",),
            vmem_limit_bytes=vmem_limit_bytes,
        ),
        cost_estimate=pl.CostEstimate(
            flops=flops, transcendentals=0, bytes_accessed=bytes_accessed),
    )(x, w1, b1, w2, b2, w3_row, b3)

    # (num_tiles, 1, tile_m) -> (n, 1); the slice only drops ragged padding
    # lanes of the (tiny) output.
    return out.reshape(num_tiles * tile_m)[:n].reshape(n, 1)


def init_params(key, in_features, hidden2):
    """Deterministic synthetic init (Kaiming-uniform-like scale, like nn.Linear)."""
    k1, k2, k3, k4, k5, k6 = jax.random.split(key, 6)

    def lin_init(kw, kb, fan_in, fan_out):
        bound = 1.0 / jnp.sqrt(fan_in)
        w = jax.random.uniform(kw, (fan_in, fan_out), jnp.float32, -bound, bound)
        b = jax.random.uniform(kb, (1, fan_out), jnp.float32, -bound, bound)
        return w, b

    w1, b1 = lin_init(k1, k2, in_features, 512)
    w2, b2 = lin_init(k3, k4, 512, hidden2)
    w3, b3 = lin_init(k5, k6, hidden2, 1)
    return {"w1": w1, "b1": b1, "w2": w2, "b2": b2, "w3": w3, "b3": b3}


def d_graph_reference(x, p):
    """Pure fp32 reference matching the PyTorch module semantics."""
    h = jnp.maximum(x @ p["w1"] + p["b1"], 0.0)
    h = jnp.maximum(h @ p["w2"] + p["b2"], 0.0)
    return h @ p["w3"] + p["b3"]


if __name__ == "__main__":
    in_features = 32
    hidden2 = 64

    key = jax.random.PRNGKey(0)
    kx, kx2, kp = jax.random.split(key, 3)
    params = init_params(kp, in_features, hidden2)

    # Weight preprocessing done ONCE (hoisted out of the forward path).
    prep_f32 = prepare_params(params, jnp.float32)
    prep_bf16 = prepare_params(params, jnp.bfloat16)

    # ---- small-shape exactness check (fp32 compute path) ----
    batch = 8
    x = jax.random.normal(kx, (batch, in_features), jnp.float32)
    ref = d_graph_reference(x, params)

    out_fp32 = jax.block_until_ready(d_graph_forward(x, prep_f32))
    assert out_fp32.shape == (batch, 1)
    assert jnp.allclose(out_fp32, ref, atol=2e-5, rtol=2e-5), "fp32 mismatch vs reference"

    # ---- default perf path (bf16 MXU inputs, fp32 accumulation) ----
    out_bf16 = jax.block_until_ready(d_graph_forward(x, prep_bf16))
    assert out_bf16.shape == (batch, 1)
    assert jnp.allclose(out_bf16, ref, atol=5e-2, rtol=5e-2), "bf16 mismatch vs reference"

    # ---- exercise grid > 1 and a ragged (non-divisible) last block ----
    batch2 = 200
    x2 = jax.random.normal(kx2, (batch2, in_features), jnp.float32)
    ref2 = d_graph_reference(x2, params)
    out2 = jax.block_until_ready(d_graph_forward(x2, prep_bf16, tile_m=64))
    assert out2.shape == (batch2, 1)
    assert jnp.allclose(out2, ref2, atol=5e-2, rtol=5e-2), "tiled/ragged mismatch vs reference"

    print("KERNEL_OK")
</pallas_src>

<mosaic_0001>
module attributes {stable_mosaic.version = 11 : i64} {
  func.func @_d_graph_kernel(%arg0: i32, %arg1: memref<8x32xf32, #tpu.memory_space<vmem>>, %arg2: memref<32x512xf32, #tpu.memory_space<vmem>>, %arg3: memref<1x512xf32, #tpu.memory_space<vmem>>, %arg4: memref<512x64xf32, #tpu.memory_space<vmem>>, %arg5: memref<1x64xf32, #tpu.memory_space<vmem>>, %arg6: memref<1x64xf32, #tpu.memory_space<vmem>>, %arg7: memref<1x1xf32, #tpu.memory_space<vmem>>, %arg8: memref<1x1x8xf32, #tpu.memory_space<vmem>>) attributes {dimension_semantics = [#tpu.dimension_semantics<parallel>], iteration_bounds = array<i64: 1>, scalar_prefetch = 0 : i64, scratch_operands = 0 : i64, tpu.core_type = #tpu.core_type<tc>, window_params = [{transform_indices = @transform_0, window_bounds = array<i64: 8, 32>}, {pipeline_mode = #tpu.pipeline_mode<synchronous>, transform_indices = @transform_1, window_bounds = array<i64: 32, 512>}, {pipeline_mode = #tpu.pipeline_mode<synchronous>, transform_indices = @transform_2, window_bounds = array<i64: 1, 512>}, {pipeline_mode = #tpu.pipeline_mode<synchronous>, transform_indices = @transform_3, window_bounds = array<i64: 512, 64>}, {pipeline_mode = #tpu.pipeline_mode<synchronous>, transform_indices = @transform_4, window_bounds = array<i64: 1, 64>}, {pipeline_mode = #tpu.pipeline_mode<synchronous>, transform_indices = @transform_5, window_bounds = array<i64: 1, 64>}, {pipeline_mode = #tpu.pipeline_mode<synchronous>, transform_indices = @transform_6, window_bounds = array<i64: 1, 1>}, {transform_indices = @transform_7, window_bounds = array<i64: 1, 1, 8>}]} {
    %c0 = arith.constant 0 : index
    %c0_0 = arith.constant 0 : index
    %0 = vector.load %arg1[%c0, %c0_0] : memref<8x32xf32, #tpu.memory_space<vmem>>, vector<8x32xf32>
    %c0_1 = arith.constant 0 : index
    %c0_2 = arith.constant 0 : index
    %1 = vector.load %arg2[%c0_1, %c0_2] : memref<32x512xf32, #tpu.memory_space<vmem>>, vector<32x512xf32>
    %cst = arith.constant dense<0.000000e+00> : vector<8x512xf32>
    %2 = tpu.matmul %0, %1, %cst {dimension_numbers = #tpu.dot_dimension_numbers<[1], [0], [0], [1], [0, 0, 1, 1], [], []>} : vector<8x32xf32>, vector<32x512xf32>, vector<8x512xf32> -> vector<8x512xf32>
    %c0_3 = arith.constant 0 : index
    %c0_4 = arith.constant 0 : index
    %3 = vector.load %arg3[%c0_3, %c0_4] : memref<1x512xf32, #tpu.memory_space<vmem>>, vector<1x512xf32>
    %4 = vector.broadcast %3 : vector<1x512xf32> to vector<8x512xf32>
    %5 = arith.addf %2, %4 : vector<8x512xf32>
    %cst_5 = arith.constant 0.000000e+00 : f32
    %6 = vector.broadcast %cst_5 : f32 to vector<8x512xf32>
    %7 = arith.maximumf %5, %6 : vector<8x512xf32>
    %c0_6 = arith.constant 0 : index
    %c0_7 = arith.constant 0 : index
    %8 = vector.load %arg4[%c0_6, %c0_7] : memref<512x64xf32, #tpu.memory_space<vmem>>, vector<512x64xf32>
    %cst_8 = arith.constant dense<0.000000e+00> : vector<8x64xf32>
    %9 = tpu.matmul %7, %8, %cst_8 {dimension_numbers = #tpu.dot_dimension_numbers<[1], [0], [0], [1], [0, 0, 1, 1], [], []>} : vector<8x512xf32>, vector<512x64xf32>, vector<8x64xf32> -> vector<8x64xf32>
    %c0_9 = arith.constant 0 : index
    %c0_10 = arith.constant 0 : index
    %10 = vector.load %arg5[%c0_9, %c0_10] : memref<1x64xf32, #tpu.memory_space<vmem>>, vector<1x64xf32>
    %11 = vector.broadcast %10 : vector<1x64xf32> to vector<8x64xf32>
    %12 = arith.addf %9, %11 : vector<8x64xf32>
    %cst_11 = arith.constant 0.000000e+00 : f32
    %13 = vector.broadcast %cst_11 : f32 to vector<8x64xf32>
    %14 = arith.maximumf %12, %13 : vector<8x64xf32>
    %c0_12 = arith.constant 0 : index
    %c0_13 = arith.constant 0 : index
    %15 = vector.load %arg6[%c0_12, %c0_13] : memref<1x64xf32, #tpu.memory_space<vmem>>, vector<1x64xf32>
    %cst_14 = arith.constant dense<0.000000e+00> : vector<1x8xf32>
    %16 = tpu.matmul %15, %14, %cst_14 {dimension_numbers = #tpu.dot_dimension_numbers<[1], [1], [0], [0], [0, 0, 1, 0], [], []>} : vector<1x64xf32>, vector<8x64xf32>, vector<1x8xf32> -> vector<1x8xf32>
    %c0_15 = arith.constant 0 : index
    %c0_16 = arith.constant 0 : index
    %17 = vector.load %arg7[%c0_15, %c0_16] : memref<1x1xf32, #tpu.memory_space<vmem>>, vector<1x1xf32>
    %18 = vector.broadcast %17 : vector<1x1xf32> to vector<1x8xf32>
    %19 = arith.addf %16, %18 : vector<1x8xf32>
    %20 = vector.shape_cast %19 : vector<1x8xf32> to vector<1x1x8xf32>
    %c0_17 = arith.constant 0 : index
    %c0_18 = arith.constant 0 : index
    %c0_19 = arith.constant 0 : index
    %21 = vector.load %arg8[%c0_17, %c0_18, %c0_19] : memref<1x1x8xf32, #tpu.memory_space<vmem>>, vector<1x1x8xf32>
    tpu.vector_store %arg8[%c0_17, %c0_18, %c0_19], %20 {strides = array<i32>} : memref<1x1x8xf32, #tpu.memory_space<vmem>>, vector<1x1x8xf32>,
    return
  }
  func.func @transform_0(%arg0: i32) -> (i32, i32) {
    %c0_i32 = arith.constant 0 : i32
    %c0_i32_0 = arith.constant 0 : i32
    return %arg0, %c0_i32 : i32, i32
  }
  func.func @transform_1(%arg0: i32) -> (i32, i32) {
    %c0_i32 = arith.constant 0 : i32
    %c0_i32_0 = arith.constant 0 : i32
    %c0_i32_1 = arith.constant 0 : i32
    return %c0_i32, %c0_i32_0 : i32, i32
  }
  func.func @transform_2(%arg0: i32) -> (i32, i32) {
    %c0_i32 = arith.constant 0 : i32
    %c0_i32_0 = arith.constant 0 : i32
    %c0_i32_1 = arith.constant 0 : i32
    return %c0_i32, %c0_i32_0 : i32, i32
  }
  func.func @transform_3(%arg0: i32) -> (i32, i32) {
    %c0_i32 = arith.constant 0 : i32
    %c0_i32_0 = arith.constant 0 : i32
    %c0_i32_1 = arith.constant 0 : i32
    return %c0_i32, %c0_i32_0 : i32, i32
  }
  func.func @transform_4(%arg0: i32) -> (i32, i32) {
    %c0_i32 = arith.constant 0 : i32
    %c0_i32_0 = arith.constant 0 : i32
    %c0_i32_1 = arith.constant 0 : i32
    return %c0_i32, %c0_i32_0 : i32, i32
  }
  func.func @transform_5(%arg0: i32) -> (i32, i32) {
    %c0_i32 = arith.constant 0 : i32
    %c0_i32_0 = arith.constant 0 : i32
    %c0_i32_1 = arith.constant 0 : i32
    return %c0_i32, %c0_i32_0 : i32, i32
  }
  func.func @transform_6(%arg0: i32) -> (i32, i32) {
    %c0_i32 = arith.constant 0 : i32
    %c0_i32_0 = arith.constant 0 : i32
    %c0_i32_1 = arith.constant 0 : i32
    return %c0_i32, %c0_i32_0 : i32, i32
  }
  func.func @transform_7(%arg0: i32) -> (i32, i32, i32) {
    %c0_i32 = arith.constant 0 : i32
    %c0_i32_0 = arith.constant 0 : i32
    %c0_i32_1 = arith.constant 0 : i32
    return %arg0, %c0_i32, %c0_i32_0 : i32, i32, i32
  }
}

</mosaic_0001>

<llo_original>
// kernel: tpu_custom_call.1
$region0: #{tpu_custom_call.1}
  #allocation0 [shape = 'u32[]', space=smem, size = 0x4, offset = 0x4, fixed_abs, tag = 'smem constant byte address 0x4 - core index']
  #allocation1 [shape = 'u32[72,128]{1,0:T(1,128)}', space=vmem, size = 0x9000, scoped, tag = 'internal scratch']
  #allocation2 [shape = 'f32[1,1]{1,0:T(1,128)S(1)}', space=vmem, size = 0x200, scoped, tag = 'scoped memory for tpu_custom_call.1']
  %s0 = inlined_call_operand.vmem [shape: f32[8,32], index: 0, kind: input, shape index: {}]
  %s1 = inlined_call_operand.vmem [shape: f32[32,512], index: 1, kind: input, shape index: {}]
  %s2 = inlined_call_operand.vmem [shape: f32[1,512], index: 2, kind: input, shape index: {}]
  %s3 = inlined_call_operand.vmem [shape: f32[512,64], index: 3, kind: input, shape index: {}]
  %s4 = inlined_call_operand.vmem [shape: f32[1,64], index: 4, kind: input, shape index: {}]
  %s5 = inlined_call_operand.vmem [shape: f32[1,64], index: 5, kind: input, shape index: {}]
  %s6 = inlined_call_operand.<no memory space> [shape: f32[1,1], index: 6, kind: input, shape index: {}]
  %s7 = inlined_call_operand.hbm [shape: f32[1,1,8], index: 7, kind: output, shape index: {}]
  %s8 = sld [smem:[#allocation0]]
  $region38: #{tpu_custom_call.1} parent=0
    _
  %s10 = ssub.s32 1, %s8
  %s11 = scalar_select 0, %s10, %s8
  %v12 = vstv %s6
  %13 = vst [vmem:[#allocation2] sm:$0x1] %v12
  $region1: #{tpu_custom_call.1} parent=0
    #allocation3 [shape = 'u8[512]{0}', space=vmem, size = 0x400, scoped, tag = 'output window, operand 0, single buffered']
    #allocation4 [shape = 's32[1]{0}', space=sflag, size = 0x4, scoped, tag = 'scoped memory for tpu_custom_call.1']
    %14 = vsyncpa [#allocation4], 0
    // Predicated region
    $region2: #{tpu_custom_call.1} parent=1 // pred_check
      _
    $region3: #{tpu_custom_call.1} parent=1 // pred_check_branch
      %16 = sbr.rel (0) target = $region5
    $region4: #{tpu_custom_call.1} parent=1 // pred_region
      _
    $region5: #{tpu_custom_call.1} parent=1 // pred_fallthru
      _
    // Predicated region
    $region6: #{tpu_custom_call.1} parent=1 // pred_check
      _
    $region7: #{tpu_custom_call.1} parent=1 // pred_check_branch
      %18 = sbr.rel (0) target = $region9
    $region8: #{tpu_custom_call.1} parent=1 // pred_region
      _
    $region9: #{tpu_custom_call.1} parent=1 // pred_fallthru
      _
    // Predicated region
    $region10: #{tpu_custom_call.1} parent=1 // pred_check
      _
    $region11: #{tpu_custom_call.1} parent=1 // pred_check_branch
      %20 = sbr.rel (0) target = $region13
    $region12: #{tpu_custom_call.1} parent=1 // pred_region
      _
    $region13: #{tpu_custom_call.1} parent=1 // pred_fallthru
      _
    // Predicated region
    $region14: #{tpu_custom_call.1} parent=1 // pred_check
      _
    $region15: #{tpu_custom_call.1} parent=1 // pred_check_branch
      %22 = sbr.rel (0) target = $region17
    $region16: #{tpu_custom_call.1} parent=1 // pred_region
      _
    $region17: #{tpu_custom_call.1} parent=1 // pred_fallthru
      _
    // Predicated region
    $region18: #{tpu_custom_call.1} parent=1 // pred_check
      _
    $region19: #{tpu_custom_call.1} parent=1 // pred_check_branch
      %24 = sbr.rel (0) target = $region21
    $region20: #{tpu_custom_call.1} parent=1 // pred_region
      _
    $region21: #{tpu_custom_call.1} parent=1 // pred_fallthru
      _
    // Predicated region
    $region22: #{tpu_custom_call.1} parent=1 // pred_check
      _
    $region23: #{tpu_custom_call.1} parent=1 // pred_check_branch
      %26 = sbr.rel (0) target = $region25
    $region24: #{tpu_custom_call.1} parent=1 // pred_region
      _
    $region25: #{tpu_custom_call.1} parent=1 // pred_fallthru
      _
    // Predicated region
    $region26: #{tpu_custom_call.1} parent=1 // pred_check
      _
    $region27: #{tpu_custom_call.1} parent=1 // pred_check_branch
      %28 = sbr.rel (0) target = $region29
    $region28: #{tpu_custom_call.1} parent=1 // pred_region
      _
    $region29: #{tpu_custom_call.1} parent=1 // pred_fallthru
      _
    %v29 = vld [vmem:[%s0] sm:$0xff]
    %v30 = vld [vmem:[%s1] sm:$0xff]
    %v31 = vld [vmem:[%s1 + $0x8] sm:$0xff]
    %v32 = vld [vmem:[%s1 + $0x10] sm:$0xff]
    %v33 = vld [vmem:[%s1 + $0x18] sm:$0xff]
    %v34 = vld [vmem:[%s1 + $0x20] sm:$0xff]
    %v35 = vld [vmem:[%s1 + $0x28] sm:$0xff]
    %v36 = vld [vmem:[%s1 + $0x30] sm:$0xff]
    %v37 = vld [vmem:[%s1 + $0x38] sm:$0xff]
    %v38 = vld [vmem:[%s1 + $0x40] sm:$0xff]
    %v39 = vld [vmem:[%s1 + $0x48] sm:$0xff]
    %v40 = vld [vmem:[%s1 + $0x50] sm:$0xff]
    %v41 = vld [vmem:[%s1 + $0x58] sm:$0xff]
    %v42 = vld [vmem:[%s1 + $0x60] sm:$0xff]
    %v43 = vld [vmem:[%s1 + $0x68] sm:$0xff]
    %v44 = vld [vmem:[%s1 + $0x70] sm:$0xff]
    %v45 = vld [vmem:[%s1 + $0x78] sm:$0xff]
    %v46 = vld [vmem:[%s2] sm:$0xf]
    %v48 = vperm.slane %v46, 0
    %v49 = vperm.slane %v46, 1
    %v50 = vperm.slane %v46, 2
    %v51 = vperm.slane %v46, 3
    %vm56 = vcmask 261120
    %v58 = vsel %vm56, %v29, 0
    %60 = vmatpush.msra.mxu0 0.0
    %61 = vmatpush.msra.mxu0 0.0
    %62 = vmatpush.msra.mxu0 0.0
    %63 = vmatpush.msra.mxu0 0.0
    %64 = vmatpush.msra.mxu0 0.0
    %65 = vmatpush.msra.mxu0 0.0
    %66 = vmatpush.msra.mxu0 0.0
    %67 = vmatpush.msra.mxu0 0.0
    %68 = vmatpush.msra.mxu0 0.0
    %69 = vmatpush.msra.mxu0 0.0
    %70 = vmatpush.msra.mxu0 0.0
    %71 = vmatpush.msra.mxu0 0.0
    %72 = vmatpush.msra.mxu0 %v42
    %73 = vmatpush.msra.mxu0 %v38
    %74 = vmatpush.msra.mxu0 %v34
    %75 = vmatpush.msra.mxu0 %v30
    %76 = vmatmul.f32.gmra.mxu0 %v58
    %v77 = vpop.f32.mrf.mxu0
    %v78 = vadd.f32 %v48, %v77
    %79 = vdwg.mxu0
    %80 = vmatpush.msra.mxu0 0.0
    %81 = vmatpush.msra.mxu0 0.0
    %82 = vmatpush.msra.mxu0 0.0
    %83 = vmatpush.msra.mxu0 0.0
    %84 = vmatpush.msra.mxu0 0.0
    %85 = vmatpush.msra.mxu0 0.0
    %86 = vmatpush.msra.mxu0 0.0
    %87 = vmatpush.msra.mxu0 0.0
    %88 = vmatpush.msra.mxu0 0.0
    %89 = vmatpush.msra.mxu0 0.0
    %90 = vmatpush.msra.mxu0 0.0
    %91 = vmatpush.msra.mxu0 0.0
    %92 = vmatpush.msra.mxu0 %v43
    %93 = vmatpush.msra.mxu0 %v39
    %94 = vmatpush.msra.mxu0 %v35
    %95 = vmatpush.msra.mxu0 %v31
    %96 = vmatmul.f32.gmra.mxu0 %v58
    %v97 = vpop.f32.mrf.mxu0
    %v98 = vadd.f32 %v49, %v97
    %99 = vdwg.mxu0
    %100 = vmatpush.msra.mxu0 0.0
    %101 = vmatpush.msra.mxu0 0.0
    %102 = vmatpush.msra.mxu0 0.0
    %103 = vmatpush.msra.mxu0 0.0
    %104 = vmatpush.msra.mxu0 0.0
    %105 = vmatpush.msra.mxu0 0.0
    %106 = vmatpush.msra.mxu0 0.0
    %107 = vmatpush.msra.mxu0 0.0
    %108 = vmatpush.msra.mxu0 0.0
    %109 = vmatpush.msra.mxu0 0.0
    %110 = vmatpush.msra.mxu0 0.0
    %111 = vmatpush.msra.mxu0 0.0
    %112 = vmatpush.msra.mxu0 %v44
    %113 = vmatpush.msra.mxu0 %v40
    %114 = vmatpush.msra.mxu0 %v36
    %115 = vmatpush.msra.mxu0 %v32
    %116 = vmatmul.f32.gmra.mxu0 %v58
    %v117 = vpop.f32.mrf.mxu0
    %v118 = vadd.f32 %v50, %v117
    %119 = vdwg.mxu0
    %120 = vmatpush.msra.mxu0 0.0
    %121 = vmatpush.msra.mxu0 0.0
    %122 = vmatpush.msra.mxu0 0.0
    %123 = vmatpush.msra.mxu0 0.0
    %124 = vmatpush.msra.mxu0 0.0
    %125 = vmatpush.msra.mxu0 0.0
    %126 = vmatpush.msra.mxu0 0.0
    %127 = vmatpush.msra.mxu0 0.0
    %128 = vmatpush.msra.mxu0 0.0
    %129 = vmatpush.msra.mxu0 0.0
    %130 = vmatpush.msra.mxu0 0.0
    %131 = vmatpush.msra.mxu0 0.0
    %132 = vmatpush.msra.mxu0 %v45
    %133 = vmatpush.msra.mxu0 %v41
    %134 = vmatpush.msra.mxu0 %v37
    %135 = vmatpush.msra.mxu0 %v33
    %136 = vmatmul.f32.gmra.mxu0 %v58
    %v137 = vpop.f32.mrf.mxu0
    %v138 = vadd.f32 %v51, %v137
    %139 = vdwg.mxu0
    %v140 = vmax.f32 %v78, 0.0
    %v141 = vmax.f32 %v98, 0.0
    %v142 = vmax.f32 %v118, 0.0
    %v143 = vmax.f32 %v138, 0.0
    %v144 = vld [vmem:[%s3] sm:$0xff]
    %v145 = vld [vmem:[%s3 + $0x8] sm:$0xff]
    %v146 = vld [vmem:[%s3 + $0x10] sm:$0xff]
    %v147 = vld [vmem:[%s3 + $0x18] sm:$0xff]
    %v148 = vld [vmem:[%s3 + $0x20] sm:$0xff]
    %v149 = vld [vmem:[%s3 + $0x28] sm:$0xff]
    %v150 = vld [vmem:[%s3 + $0x30] sm:$0xff]
    %v151 = vld [vmem:[%s3 + $0x38] sm:$0xff]
    %v152 = vld [vmem:[%s3 + $0x40] sm:$0xff]
    %v153 = vld [vmem:[%s3 + $0x48] sm:$0xff]
    %v154 = vld [vmem:[%s3 + $0x50] sm:$0xff]
    %v155 = vld [vmem:[%s3 + $0x58] sm:$0xff]
    %v156 = vld [vmem:[%s3 + $0x60] sm:$0xff]
    %v157 = vld [vmem:[%s3 + $0x68] sm:$0xff]
    %v158 = vld [vmem:[%s3 + $0x70] sm:$0xff]
    %v159 = vld [vmem:[%s3 + $0x78] sm:$0xff]
    %v160 = vld [vmem:[%s3 + $0x80] sm:$0xff]
    %v161 = vld [vmem:[%s3 + $0x88] sm:$0xff]
    %v162 = vld [vmem:[%s3 + $0x90] sm:$0xff]
    %v163 = vld [vmem:[%s3 + $0x98] sm:$0xff]
    %v164 = vld [vmem:[%s3 + $0xa0] sm:$0xff]
    %v165 = vld [vmem:[%s3 + $0xa8] sm:$0xff]
    %v166 = vld [vmem:[%s3 + $0xb0] sm:$0xff]
    %v167 = vld [vmem:[%s3 + $0xb8] sm:$0xff]
    %v168 = vld [vmem:[%s3 + $0xc0] sm:$0xff]
    %v169 = vld [vmem:[%s3 + $0xc8] sm:$0xff]
    %v170 = vld [vmem:[%s3 + $0xd0] sm:$0xff]
    %v171 = vld [vmem:[%s3 + $0xd8] sm:$0xff]
    %v172 = vld [vmem:[%s3 + $0xe0] sm:$0xff]
    %v173 = vld [vmem:[%s3 + $0xe8] sm:$0xff]
    %v174 = vld [vmem:[%s3 + $0xf0] sm:$0xff]
    %v175 = vld [vmem:[%s3 + $0xf8] sm:$0xff]
    %v176 = vld [vmem:[%s3 + $0x100] sm:$0xff]
    %v177 = vld [vmem:[%s3 + $0x108] sm:$0xff]
    %v178 = vld [vmem:[%s3 + $0x110] sm:$0xff]
    %v179 = vld [vmem:[%s3 + $0x118] sm:$0xff]
    %v180 = vld [vmem:[%s3 + $0x120] sm:$0xff]
    %v181 = vld [vmem:[%s3 + $0x128] sm:$0xff]
    %v182 = vld [vmem:[%s3 + $0x130] sm:$0xff]
    %v183 = vld [vmem:[%s3 + $0x138] sm:$0xff]
    %v184 = vld [vmem:[%s3 + $0x140] sm:$0xff]
    %v185 = vld [vmem:[%s3 + $0x148] sm:$0xff]
    %v186 = vld [vmem:[%s3 + $0x150] sm:$0xff]
    %v187 = vld [vmem:[%s3 + $0x158] sm:$0xff]
    %v188 = vld [vmem:[%s3 + $0x160] sm:$0xff]
    %v189 = vld [vmem:[%s3 + $0x168] sm:$0xff]
    %v190 = vld [vmem:[%s3 + $0x170] sm:$0xff]
    %v191 = vld [vmem:[%s3 + $0x178] sm:$0xff]
    %v192 = vld [vmem:[%s3 + $0x180] sm:$0xff]
    %v193 = vld [vmem:[%s3 + $0x188] sm:$0xff]
    %v194 = vld [vmem:[%s3 + $0x190] sm:$0xff]
    %v195 = vld [vmem:[%s3 + $0x198] sm:$0xff]
    %v196 = vld [vmem:[%s3 + $0x1a0] sm:$0xff]
    %v197 = vld [vmem:[%s3 + $0x1a8] sm:$0xff]
    %v198 = vld [vmem:[%s3 + $0x1b0] sm:$0xff]
    %v199 = vld [vmem:[%s3 + $0x1b8] sm:$0xff]
    %v200 = vld [vmem:[%s3 + $0x1c0] sm:$0xff]
    %v201 = vld [vmem:[%s3 + $0x1c8] sm:$0xff]
    %v202 = vld [vmem:[%s3 + $0x1d0] sm:$0xff]
    %v203 = vld [vmem:[%s3 + $0x1d8] sm:$0xff]
    %v204 = vld [vmem:[%s3 + $0x1e0] sm:$0xff]
    %v205 = vld [vmem:[%s3 + $0x1e8] sm:$0xff]
    %v206 = vld [vmem:[%s3 + $0x1f0] sm:$0xff]
    %v207 = vld [vmem:[%s3 + $0x1f8] sm:$0xff]
    %v208 = vld [vmem:[%s4] sm:$0x1]
    %v210 = vperm.slane %v208, 0
    %212 = vmatpush.msra.mxu0 %v159
    %213 = vmatpush.msra.mxu0 %v158
    %214 = vmatpush.msra.mxu0 %v157
    %215 = vmatpush.msra.mxu0 %v156
    %216 = vmatpush.msra.mxu0 %v155
    %217 = vmatpush.msra.mxu0 %v154
    %218 = vmatpush.msra.mxu0 %v153
    %219 = vmatpush.msra.mxu0 %v152
    %220 = vmatpush.msra.mxu0 %v151
    %221 = vmatpush.msra.mxu0 %v150
    %222 = vmatpush.msra.mxu0 %v149
    %223 = vmatpush.msra.mxu0 %v148
    %224 = vmatpush.msra.mxu0 %v147
    %225 = vmatpush.msra.mxu0 %v146
    %226 = vmatpush.msra.mxu0 %v145
    %227 = vmatpush.msra.mxu0 %v144
    %228 = vmatmul.f32.gmra.mxu0 %v140
    %v229 = vpop.f32.mrf.mxu0
    %v230 = vadd.f32 %v210, %v229
    %231 = vdwg.mxu0
    %232 = vmatpush.msra.mxu0 %v175
    %233 = vmatpush.msra.mxu0 %v174
    %234 = vmatpush.msra.mxu0 %v173
    %235 = vmatpush.msra.mxu0 %v172
    %236 = vmatpush.msra.mxu0 %v171
    %237 = vmatpush.msra.mxu0 %v170
    %238 = vmatpush.msra.mxu0 %v169
    %239 = vmatpush.msra.mxu0 %v168
    %240 = vmatpush.msra.mxu0 %v167
    %241 = vmatpush.msra.mxu0 %v166
    %242 = vmatpush.msra.mxu0 %v165
    %243 = vmatpush.msra.mxu0 %v164
    %244 = vmatpush.msra.mxu0 %v163
    %245 = vmatpush.msra.mxu0 %v162
    %246 = vmatpush.msra.mxu0 %v161
    %247 = vmatpush.msra.mxu0 %v160
    %248 = vmatmul.f32.gmra.mxu0 %v141
    %v249 = vpop.f32.mrf.mxu0
    %v250 = vadd.f32 %v230, %v249
    %251 = vdwg.mxu0
    %252 = vmatpush.msra.mxu0 %v191
    %253 = vmatpush.msra.mxu0 %v190
    %254 = vmatpush.msra.mxu0 %v189
    %255 = vmatpush.msra.mxu0 %v188
    %256 = vmatpush.msra.mxu0 %v187
    %257 = vmatpush.msra.mxu0 %v186
    %258 = vmatpush.msra.mxu0 %v185
    %259 = vmatpush.msra.mxu0 %v184
    %260 = vmatpush.msra.mxu0 %v183
    %261 = vmatpush.msra.mxu0 %v182
    %262 = vmatpush.msra.mxu0 %v181
    %263 = vmatpush.msra.mxu0 %v180
    %264 = vmatpush.msra.mxu0 %v179
    %265 = vmatpush.msra.mxu0 %v178
    %266 = vmatpush.msra.mxu0 %v177
    %267 = vmatpush.msra.mxu0 %v176
    %268 = vmatmul.f32.gmra.mxu0 %v142
    %v269 = vpop.f32.mrf.mxu0
    %v270 = vadd.f32 %v250, %v269
    %271 = vdwg.mxu0
    %272 = vmatpush.msra.mxu0 %v207
    %273 = vmatpush.msra.mxu0 %v206
    %274 = vmatpush.msra.mxu0 %v205
    %275 = vmatpush.msra.mxu0 %v204
    %276 = vmatpush.msra.mxu0 %v203
    %277 = vmatpush.msra.mxu0 %v202
    %278 = vmatpush.msra.mxu0 %v201
    %279 = vmatpush.msra.mxu0 %v200
    %280 = vmatpush.msra.mxu0 %v199
    %281 = vmatpush.msra.mxu0 %v198
    %282 = vmatpush.msra.mxu0 %v197
    %283 = vmatpush.msra.mxu0 %v196
    %284 = vmatpush.msra.mxu0 %v195
    %285 = vmatpush.msra.mxu0 %v194
    %286 = vmatpush.msra.mxu0 %v193
    %287 = vmatpush.msra.mxu0 %v192
    %288 = vmatmul.f32.gmra.mxu0 %v143
    %v289 = vpop.f32.mrf.mxu0
    %v290 = vadd.f32 %v270, %v289
    %291 = vdwg.mxu0
    %v292 = vmax.f32 %v290, 0.0
    %v293 = vld [vmem:[%s5] sm:$0x1]
    %v294 = vld [vmem:[#allocation2] sm:$0x1]
    %296 = vset.pattern.permute.xlu0 0
    %297 = vperm.xlu0 %296, %v294
    %v298 = vpop.permute.xlu0 %297
    %v300 = vperm.slane %v298, 0
    %vm301 = vcmask 523264
    %v303 = vsel %vm301, %v293, 0
    %v306 = vsel %vm301, %v292, 0
    %308 = vmatpush.xpose.msra.mxu0 0.0
    %309 = vmatpush.xpose.msra.mxu0 0.0
    %310 = vmatpush.xpose.msra.mxu0 0.0
    %311 = vmatpush.xpose.msra.mxu0 0.0
    %312 = vmatpush.xpose.msra.mxu0 0.0
    %313 = vmatpush.xpose.msra.mxu0 0.0
    %314 = vmatpush.xpose.msra.mxu0 0.0
    %315 = vmatpush.xpose.msra.mxu0 0.0
    %316 = vmatpush.xpose.msra.mxu0 0.0
    %317 = vmatpush.xpose.msra.mxu0 0.0
    %318 = vmatpush.xpose.msra.mxu0 0.0
    %319 = vmatpush.xpose.msra.mxu0 0.0
    %320 = vmatpush.xpose.msra.mxu0 0.0
    %321 = vmatpush.xpose.msra.mxu0 0.0
    %322 = vmatpush.xpose.msra.mxu0 0.0
    %323 = vmatpush.xpose.msra.mxu0 %v306
    %324 = vmatmul.f32.gmra.mxu0 %v303
    %v325 = vpop.f32.mrf.mxu0
    %v326 = vadd.f32 %v300, %v325
    %327 = vdwg.mxu0
    %vm328 = vcmask 57344
    %329 = vst.msk [vmem:[#allocation3] sm:$0x1] %vm328, %v326
    // Predicated region
    $region30: #{tpu_custom_call.1} parent=1 // pred_check
      _
    $region31: #{tpu_custom_call.1} parent=1 // pred_check_branch
      %331 = sbr.rel (0) target = $region33
    $region32: #{tpu_custom_call.1} parent=1 // pred_region
      %333 = vsyncadd [#allocation4], 0
      %s335 = sshll.u32 [#allocation3], 4
      %s336 = int_to_ptr.vmem [resolvable:$true] %s335
      %s337 = sshll.u32 %s7, 4
      %s338 = int_to_ptr.hbm [resolvable:$true] %s337
      %340 = dma.vmem_to_hbm [thread:$0]  %s336, 16, %s338, [#allocation4]
    $region33: #{tpu_custom_call.1} parent=1 // pred_fallthru
      _
    // Predicated region
    $region34: #{tpu_custom_call.1} parent=1 // pred_check
      _
    $region35: #{tpu_custom_call.1} parent=1 // pred_check_branch
      %342 = sbr.rel (0) target = $region37
    $region36: #{tpu_custom_call.1} parent=1 // pred_region
      %344 = dma.done [#allocation4], 16
    $region37: #{tpu_custom_call.1} parent=1 // pred_fallthru
      _
    %345 = vsyncpa [#allocation4], 1

</llo_original>
